<compile_context>
chip_gen: v7x
topology: tpu7x:2x2x1
jax: 0.10.0
libtpu: 0.0.40
codegen_flags: <defaults>
</compile_context>

<pallas_src>
import jax
import jax.numpy as jnp
from jax.experimental import pallas as pl
from jax.experimental.pallas import tpu as pltpu


# --------------------------------------------------------------------------
# Kernels
# --------------------------------------------------------------------------
def _npn_rowwise_kernel(x_ref, ab_ref, o_ref):
    # x: (row_tile, col_tile); ab: (row_tile, 2) -> per-row a, b columns.
    x = x_ref[...].astype(jnp.float32)
    a = ab_ref[:, 0:1]
    b = ab_ref[:, 1:2]
    o_ref[...] = (x * a + b).astype(o_ref.dtype)


def _npn_lanewise_kernel(x_ref, ab_ref, o_ref):
    # x: (row_tile, col_tile); ab: (2, col_tile) -> per-lane a, b rows.
    x = x_ref[...].astype(jnp.float32)
    a = ab_ref[0:1, :]
    b = ab_ref[1:2, :]
    o_ref[...] = (x * a + b).astype(o_ref.dtype)


# --------------------------------------------------------------------------
# Tiling helpers
# --------------------------------------------------------------------------
def _sublane_multiple(dtype):
    # Sublane packing multiple: 8 for 4-byte, 16 for 2-byte, 32 for 1-byte.
    return {4: 8, 2: 16, 1: 32}.get(jnp.dtype(dtype).itemsize, 8)


def _vmem_plan():
    """Generation-aware VMEM limit, per-step budget and x-block target."""
    cap = 64 << 20  # conservative default (v7x per-core VMEM) if query fails
    try:
        info = pltpu.get_tpu_info()
        cap = int(getattr(info, "vmem_capacity_bytes", cap))
    except Exception:
        pass
    if cap > (96 << 20):          # v5e / v6e: 128 MiB physical VMEM
        vmem_limit = 96 << 20
        x_target = 16 << 20
    else:                         # v7x: 64 MiB physical (or unknown chip)
        vmem_limit = 48 << 20
        x_target = 8 << 20
    # Per-step budget for ONE copy of all blocks (everything is
    # double-buffered by the pipeline), minus a little headroom.
    step_budget = vmem_limit // 2 - (2 << 20)
    return vmem_limit, step_budget, x_target


def _choose_tiles(R, Ccols, itemsize, sub, step_budget, x_target,
                  ab_row_bytes, ab_col_bytes):
    """Pick (row_tile, col_tile) obeying the (8,128) rule and the VMEM budget.

    Per-step VMEM cost model:
      row_tile*col_tile*itemsize*2  (x + out)
      + row_tile*ab_row_bytes       (per-row affine, padded to 128 lanes)
      + col_tile*ab_col_bytes       (per-lane affine, padded to 8 sublanes)
    """
    full_row = Ccols * itemsize
    min_rows = min(R, sub)

    def full_width_cost(r):
        return r * (2 * full_row + ab_row_bytes) + Ccols * ab_col_bytes

    if full_width_cost(min_rows) <= step_budget or Ccols <= 128:
        # Full-width rows; as many rows as budget / target allow.
        col_tile = Ccols
        denom = 2 * full_row + ab_row_bytes
        rows_fit = (step_budget - Ccols * ab_col_bytes) // max(denom, 1)
        rows_fit = min(rows_fit, max(x_target // max(full_row, 1), 1))
        rows_fit = max((rows_fit // sub) * sub, min_rows)
        row_tile = R if R <= rows_fit else rows_fit
    else:
        # Rows are huge: minimal sublane group of rows, tile the lane axis.
        row_tile = min_rows
        denom = 2 * row_tile * itemsize + ab_col_bytes
        cols_fit = step_budget // max(denom, 1)
        cols_fit = min(cols_fit, max(x_target // max(row_tile * itemsize, 1), 128))
        cols_fit = max(128, (cols_fit // 128) * 128)
        col_tile = Ccols if Ccols <= cols_fit else cols_fit

    # Guarantee >=2 grid steps on non-trivial tensors: both v7x TensorCores
    # get work and DMA/compute can overlap.
    total_bytes = R * Ccols * itemsize
    if (pl.cdiv(R, row_tile) * pl.cdiv(Ccols, col_tile) == 1
            and total_bytes > (2 << 20)):
        if R >= 2 * sub:
            row_tile = max(sub, (pl.cdiv(R, 2) // sub) * sub)
        elif Ccols >= 256:
            col_tile = max(128, (pl.cdiv(Ccols, 2) // 128) * 128)

    return row_tile, col_tile


# --------------------------------------------------------------------------
# Forward
# --------------------------------------------------------------------------
def npn_forward(x_nchw, mu, var, scale, shift, noise_mu, noise_var, eps=1e-5):
    """x_nchw: (N, C, H, W). Params / noise: (C,). Returns (N, C, H, W)."""
    N, C, H, W = x_nchw.shape
    HW = H * W
    f32 = jnp.float32
    itemsize = jnp.dtype(x_nchw.dtype).itemsize
    sub = _sublane_multiple(x_nchw.dtype)

    # Fold params + noise into one per-channel affine (f32, matches reference
    # algebra: out = a*(x - mu*noise_mu) + shift).
    a_c = scale.astype(f32) / jnp.sqrt(var.astype(f32) * noise_var.astype(f32)
                                       + f32(eps))
    b_c = shift.astype(f32) - a_c * (mu.astype(f32) * noise_mu.astype(f32))

    vmem_limit, step_budget, x_target = _vmem_plan()

    # Layout choice: keep the lane axis a multiple of 128 whenever possible.
    lanewise = (HW % 128 != 0) and ((C * HW) % 128 == 0)

    if not lanewise:
        # Default: (N*C, H*W) view, per-channel affine as per-row columns.
        R, Ccols = N * C, HW
        x2d = x_nchw.reshape(R, Ccols)
        ab = jnp.stack([jnp.tile(a_c, N), jnp.tile(b_c, N)], axis=1)   # (R, 2)
        row_tile, col_tile = _choose_tiles(
            R, Ccols, itemsize, sub, step_budget, x_target,
            ab_row_bytes=512, ab_col_bytes=0)
        grid = (pl.cdiv(R, row_tile), pl.cdiv(Ccols, col_tile))
        in_specs = [
            pl.BlockSpec((row_tile, col_tile), lambda i, j: (i, j)),   # x
            # ab ignores the (inner) column index -> not re-DMAed per step.
            pl.BlockSpec((row_tile, 2), lambda i, j: (i, 0)),          # ab
        ]
        out_specs = pl.BlockSpec((row_tile, col_tile), lambda i, j: (i, j))
        kernel = _npn_rowwise_kernel
    else:
        # Lane-dense fallback: (N, C*HW) view, affine expanded along lanes.
        R, Ccols = N, C * HW
        x2d = x_nchw.reshape(R, Ccols)
        ab = jnp.stack([jnp.repeat(a_c, HW), jnp.repeat(b_c, HW)], axis=0)  # (2, Ccols)
        row_tile, col_tile = _choose_tiles(
            R, Ccols, itemsize, sub, step_budget, x_target,
            ab_row_bytes=0, ab_col_bytes=32)
        # Column axis outer / row axis inner so the per-column ab block stays
        # resident across the inner row sweep.
        grid = (pl.cdiv(Ccols, col_tile), pl.cdiv(R, row_tile))
        in_specs = [
            pl.BlockSpec((row_tile, col_tile), lambda j, i: (i, j)),   # x
            pl.BlockSpec((2, col_tile), lambda j, i: (0, j)),          # ab
        ]
        out_specs = pl.BlockSpec((row_tile, col_tile), lambda j, i: (i, j))
        kernel = _npn_lanewise_kernel

    cost = pl.CostEstimate(
        flops=2 * R * Ccols,
        transcendentals=0,
        bytes_accessed=2 * R * Ccols * itemsize + int(ab.size) * 4,
    )

    out2d = pl.pallas_call(
        kernel,
        out_shape=jax.ShapeDtypeStruct((R, Ccols), x2d.dtype),
        grid_spec=pltpu.PrefetchScalarGridSpec(
            num_scalar_prefetch=0,
            grid=grid,
            in_specs=in_specs,
            out_specs=out_specs,
        ),
        compiler_params=pltpu.CompilerParams(
            dimension_semantics=("parallel", "parallel"),
            vmem_limit_bytes=vmem_limit,
        ),
        cost_estimate=cost,
    )(x2d, ab)

    return out2d.reshape(N, C, H, W)


# --------------------------------------------------------------------------
# Demo / self-check
# --------------------------------------------------------------------------
if __name__ == "__main__":
    key = jax.random.PRNGKey(0)
    k_x, k_nmu, k_nvar = jax.random.split(key, 3)

    N, C, H, W = 2, 4, 16, 16
    sigma = 0.2
    eps = 1e-5

    x = jax.random.normal(k_x, (N, C, H, W), dtype=jnp.float32)

    # Parameters as in NPN.__init__ (deterministic):
    mu = jnp.zeros((C,), dtype=jnp.float32)
    var = jnp.ones((C,), dtype=jnp.float32)
    scale = jnp.ones((C,), dtype=jnp.float32)
    shift = jnp.zeros((C,), dtype=jnp.float32)

    # noise = 1 + randn_like(param) * sigma (per-channel), drawn in the wrapper
    # so the kernel consumes exactly the same values as the reference check.
    noise_mu = 1.0 + jax.random.normal(k_nmu, (C,), dtype=jnp.float32) * sigma
    noise_var = 1.0 + jax.random.normal(k_nvar, (C,), dtype=jnp.float32) * sigma

    out = npn_forward(x, mu, var, scale, shift, noise_mu, noise_var, eps=eps)
    out = jax.block_until_ready(out)

    # Pure-JAX reference (same noise) matching the PyTorch forward.
    mu_e = (mu * noise_mu).reshape(1, C, 1, 1)
    var_e = (var * noise_var).reshape(1, C, 1, 1)
    ref = scale.reshape(1, C, 1, 1) * (x - mu_e) / jnp.sqrt(var_e + eps) \
        + shift.reshape(1, C, 1, 1)
    assert out.shape == (N, C, H, W)
    assert jnp.allclose(out, ref, atol=1e-5, rtol=1e-5)

    print("KERNEL_OK")
</pallas_src>

<mosaic_0001>
module attributes {stable_mosaic.version = 11 : i64} {
  func.func @_npn_rowwise_kernel(%arg0: i32, %arg1: i32, %arg2: memref<8x256xf32, #tpu.memory_space<vmem>>, %arg3: memref<8x2xf32, #tpu.memory_space<vmem>>, %arg4: memref<8x256xf32, #tpu.memory_space<vmem>>) attributes {dimension_semantics = [#tpu.dimension_semantics<parallel>, #tpu.dimension_semantics<parallel>], iteration_bounds = array<i64: 1, 1>, scalar_prefetch = 0 : i64, scratch_operands = 0 : i64, tpu.core_type = #tpu.core_type<tc>, window_params = [{transform_indices = @transform_0, window_bounds = array<i64: 8, 256>}, {transform_indices = @transform_1, window_bounds = array<i64: 8, 2>}, {transform_indices = @transform_2, window_bounds = array<i64: 8, 256>}]} {
    %c0 = arith.constant 0 : index
    %c0_0 = arith.constant 0 : index
    %0 = vector.load %arg2[%c0, %c0_0] : memref<8x256xf32, #tpu.memory_space<vmem>>, vector<8x256xf32>
    %c0_1 = arith.constant 0 : index
    %c0_2 = arith.constant 0 : index
    %1 = vector.load %arg3[%c0_1, %c0_2] : memref<8x2xf32, #tpu.memory_space<vmem>>, vector<8x1xf32>
    %c0_3 = arith.constant 0 : index
    %c1 = arith.constant 1 : index
    %2 = vector.load %arg3[%c0_3, %c1] : memref<8x2xf32, #tpu.memory_space<vmem>>, vector<8x1xf32>
    %3 = vector.broadcast %1 : vector<8x1xf32> to vector<8x256xf32>
    %4 = arith.mulf %0, %3 : vector<8x256xf32>
    %5 = vector.broadcast %2 : vector<8x1xf32> to vector<8x256xf32>
    %6 = arith.addf %4, %5 : vector<8x256xf32>
    %c0_4 = arith.constant 0 : index
    %c0_5 = arith.constant 0 : index
    %7 = vector.load %arg4[%c0_4, %c0_5] : memref<8x256xf32, #tpu.memory_space<vmem>>, vector<8x256xf32>
    tpu.vector_store %arg4[%c0_4, %c0_5], %6 {strides = array<i32>} : memref<8x256xf32, #tpu.memory_space<vmem>>, vector<8x256xf32>,
    return
  }
  func.func @transform_0(%arg0: i32, %arg1: i32) -> (i32, i32) {
    %c0_i32 = arith.constant 0 : i32
    return %arg0, %arg1 : i32, i32
  }
  func.func @transform_1(%arg0: i32, %arg1: i32) -> (i32, i32) {
    %c0_i32 = arith.constant 0 : i32
    %c0_i32_0 = arith.constant 0 : i32
    return %arg0, %c0_i32 : i32, i32
  }
  func.func @transform_2(%arg0: i32, %arg1: i32) -> (i32, i32) {
    %c0_i32 = arith.constant 0 : i32
    return %arg0, %arg1 : i32, i32
  }
}

</mosaic_0001>

<llo_original>
// kernel: tpu_custom_call.1
$region0: #{tpu_custom_call.1}
  #allocation0 [shape = 'u32[]', space=smem, size = 0x4, offset = 0x4, fixed_abs, tag = 'smem constant byte address 0x4 - core index']
  #allocation1 [shape = 'u32[144,128]{1,0:T(1,128)}', space=vmem, size = 0x12000, scoped, tag = 'internal scratch']
  %s0 = inlined_call_operand.hbm [shape: f32[8,256], index: 0, kind: input, shape index: {}]
  %s1 = inlined_call_operand.vmem [shape: f32[8,2], index: 1, kind: input, shape index: {}]
  %s2 = inlined_call_operand.hbm [shape: f32[8,256], index: 2, kind: output, shape index: {}]
  %s3 = sld [smem:[#allocation0]]
  $region22: #{tpu_custom_call.1} parent=0
    _
  %s5 = ssub.s32 1, %s3
  %s6 = scalar_select 0, %s5, %s3
  $region1: #{tpu_custom_call.1} parent=0
    #allocation2 [shape = 'u8[8192]{0}', space=vmem, size = 0x2000, scoped, tag = 'input window, operand 0, single buffered']
    #allocation3 [shape = 's32[1]{0}', space=sflag, size = 0x4, scoped, tag = 'scoped memory for tpu_custom_call.1']
    #allocation4 [shape = 's32[1]{0}', space=sflag, size = 0x4, scoped, tag = 'scoped memory for tpu_custom_call.1']
    #allocation5 [shape = 'u8[8192]{0}', space=vmem, size = 0x2000, scoped, tag = 'output window, operand 0, single buffered']
    %7 = vsyncpa [#allocation3], 0
    %8 = vsyncpa [#allocation4], 0
    // Predicated region
    $region2: #{tpu_custom_call.1} parent=1 // pred_check
      _
    $region3: #{tpu_custom_call.1} parent=1 // pred_check_branch
      %10 = sbr.rel (0) target = $region5
    $region4: #{tpu_custom_call.1} parent=1 // pred_region
      %s12 = ssub.s32 256, 256
      %13 = vsyncadd [#allocation3], %s12
      %s15 = sshll.u32 [#allocation2], 4
      %s16 = int_to_ptr.vmem [resolvable:$true] %s15
      %18 = dma.hbm_to_vmem [thread:$0]  %s0, 256, %s16, [#allocation3]
    $region5: #{tpu_custom_call.1} parent=1 // pred_fallthru
      _
    // Predicated region
    $region6: #{tpu_custom_call.1} parent=1 // pred_check
      _
    $region7: #{tpu_custom_call.1} parent=1 // pred_check_branch
      %20 = sbr.rel (0) target = $region9
    $region8: #{tpu_custom_call.1} parent=1 // pred_region
      _
    $region9: #{tpu_custom_call.1} parent=1 // pred_fallthru
      _
    // Predicated region
    $region10: #{tpu_custom_call.1} parent=1 // pred_check
      _
    $region11: #{tpu_custom_call.1} parent=1 // pred_check_branch
      %22 = sbr.rel (0) target = $region13
    $region12: #{tpu_custom_call.1} parent=1 // pred_region
      %23 = dma.done [#allocation3], 256
    $region13: #{tpu_custom_call.1} parent=1 // pred_fallthru
      _
    %v24 = vld [vmem:[#allocation2] sm:$0xff]
    %v25 = vld [vmem:[#allocation2 + $0x8] sm:$0xff]
    %v26 = vld [vmem:[%s1] sm:$0xff]
    %28 = vset.pattern.permute.xlu0 0
    %29 = vperm.xlu0 %28, %v26
    %v30 = vpop.permute.xlu0 %29
    %v32 = vmul.f32 %v24, %v30
    %v33 = vmul.f32 %v25, %v30
    %34 = vset.pattern.permute.xlu0 1
    %35 = vperm.xlu0 %34, %v26
    %v36 = vpop.permute.xlu0 %35
    %v38 = vadd.f32 %v32, %v36
    %v39 = vadd.f32 %v33, %v36
    %40 = vst [vmem:[#allocation5] sm:$0xff] %v38
    %41 = vst [vmem:[#allocation5 + $0x8] sm:$0xff] %v39
    // Predicated region
    $region14: #{tpu_custom_call.1} parent=1 // pred_check
      _
    $region15: #{tpu_custom_call.1} parent=1 // pred_check_branch
      %43 = sbr.rel (0) target = $region17
    $region16: #{tpu_custom_call.1} parent=1 // pred_region
      %s45 = ssub.s32 256, 256
      %46 = vsyncadd [#allocation4], %s45
      %s48 = sshll.u32 [#allocation5], 4
      %s49 = int_to_ptr.vmem [resolvable:$true] %s48
      %51 = dma.vmem_to_hbm [thread:$0]  %s49, 256, %s2, [#allocation4]
    $region17: #{tpu_custom_call.1} parent=1 // pred_fallthru
      _
    // Predicated region
    $region18: #{tpu_custom_call.1} parent=1 // pred_check
      _
    $region19: #{tpu_custom_call.1} parent=1 // pred_check_branch
      %53 = sbr.rel (0) target = $region21
    $region20: #{tpu_custom_call.1} parent=1 // pred_region
      %54 = dma.done [#allocation4], 256
    $region21: #{tpu_custom_call.1} parent=1 // pred_fallthru
      _
    %55 = vsyncpa [#allocation3], 1
    %56 = vsyncpa [#allocation4], 1

</llo_original>
